<compile_context>
chip_gen: v7x
topology: tpu7x:2x2x1
jax: 0.10.0
libtpu: 0.0.40
codegen_flags: <defaults>
</compile_context>

<pallas_src>
import jax
import jax.numpy as jnp
from jax.experimental import pallas as pl
from jax.experimental.pallas import tpu as pltpu

BN_EPS = 1e-5
LANE = 128                         # conv-output channels padded to this lane width
CONV_TILE_TARGET_BYTES = 24 << 20  # per-step VMEM budget for the fused conv pass
BN_TILE_TARGET_BYTES = 4 << 20     # per-block bytes for the mem-bound BN2+ReLU pass


def _round_up(x, m):
    return ((x + m - 1) // m) * m


def _vmem_limit_bytes():
    """Generation-aware scoped-VMEM limit: ~3/4 of per-TC physical, capped.

    v5e/v6e (128 MiB/TC) -> ~96 MiB; v7x (64 MiB/TC) -> ~48 MiB.
    """
    cap = 64 * 1024 * 1024
    try:
        cap = int(getattr(pltpu.get_tpu_info(), "vmem_capacity_bytes", cap))
    except Exception:
        pass
    return int(min(cap * 3 // 4, 96 * 1024 * 1024))


def _pick_tile_rows(h, per_row_bytes, target_bytes):
    """Largest divisor of h (>= 2, or h itself) whose tile fits the byte target."""
    divs = [d for d in range(h, 0, -1) if h % d == 0]
    for d in divs:
        if (d >= 2 or d == h) and d * per_row_bytes <= target_bytes:
            return d
    for d in reversed(divs):
        if d >= 2 or d == h:
            return d
    return h


def _conv_row_bytes(w, cin, cp):
    # rough per-output-row VMEM bytes of the fused conv pass (bf16 activations +
    # im2col temporaries, f32 accumulators, double-buffered in/out blocks).
    return w * (22 * cin + 24 * cp)


def _bn_row_bytes(w, cp, cout):
    # bf16 input block (double-buffered) + f32 temp + f32 output block (d-buf).
    return w * (6 * cp + 8 * cout)


def _check_tile(h, th):
    assert h % th == 0 and (th >= 2 or th == h), (h, th)


# ---------------------------------------------------------------------------
# In-kernel helpers (value-level, traced inside the Pallas kernels)
# ---------------------------------------------------------------------------

def _halo_row(ref, zero_pred):
    """Load a (1, 1, W, C) halo-row block and zero it at the image border."""
    r = ref[0]                                     # (1, W, C)
    return jnp.where(zero_pred, jnp.zeros_like(r), r)


def _pad_w(x):
    """Zero-pad the W (sublane) axis by 1 on each side: (R, W, C)->(R, W+2, C)."""
    r, _, c = x.shape
    zc = jnp.zeros((r, 1, c), x.dtype)
    return jnp.concatenate([zc, x, zc], axis=1)


def _conv3x3_k9(xh, w):
    """3x3 conv as ONE MXU matmul with K = 9*Cin (dy and dx folded into K).

    xh: (TR+2, W+2, Cin) bf16, row/col halos already included.
    w:  (9*Cin, Cp) bf16, K ordered (dy, dx, cin).
    Returns (TR*W, Cp) f32.
    """
    rp, wp, cin = xh.shape
    tr, ww = rp - 2, wp - 2
    taps = [xh[dy:dy + tr, dx:dx + ww, :] for dy in range(3) for dx in range(3)]
    xc = jnp.concatenate(taps, axis=-1).reshape(tr * ww, 9 * cin)
    return jnp.dot(xc, w, preferred_element_type=jnp.float32)


def _conv3x3_k3(xh, w):
    """3x3 conv as 3 MXU matmuls with K = 3*C (dx folded into K, loop over dy).

    xh: (TR+2, W+2, C) bf16 (halos included).  w: (3, 3*C, Cp) bf16.
    Accumulator initialized from the dy=0 matmul (no zeros + add pass).
    Returns (TR*W, Cp) f32.
    """
    rp, wp, c = xh.shape
    tr, ww = rp - 2, wp - 2
    xc = jnp.concatenate(
        [xh[:, 0:ww, :], xh[:, 1:ww + 1, :], xh[:, 2:ww + 2, :]], axis=-1)
    acc = jnp.dot(xc[0:tr].reshape(tr * ww, 3 * c), w[0],
                  preferred_element_type=jnp.float32)
    for dy in (1, 2):
        acc = acc + jnp.dot(xc[dy:dy + tr].reshape(tr * ww, 3 * c), w[dy],
                            preferred_element_type=jnp.float32)
    return acc


# ---------------------------------------------------------------------------
# Kernels
# ---------------------------------------------------------------------------

def _conv1_stats_kernel(x_ref, t1_ref, b1_ref, w1_ref, stats_ref):
    """conv1 on one H-tile -> per-tile BN1 partial stats only (no y1 output)."""
    h, nh = pl.program_id(1), pl.num_programs(1)
    cp = stats_ref.shape[-1]
    top = _halo_row(t1_ref, h == 0)
    bot = _halo_row(b1_ref, h == nh - 1)
    xh = _pad_w(jnp.concatenate([top, x_ref[0], bot], axis=0))   # (TH+2, W+2, Cin)
    acc = _conv3x3_k9(xh, w1_ref[...])                           # (TH*W, Cp) f32
    s = jnp.sum(acc, axis=0, keepdims=True)
    sq = jnp.sum(acc * acc, axis=0, keepdims=True)
    stats_ref[...] = jnp.concatenate([s, sq], axis=0).reshape(1, 1, 2, cp)


def _fused_conv_kernel(x_ref, t2_ref, t1_ref, b1_ref, b2_ref,
                       w1_ref, sc1_ref, sh1_ref, w2_ref, y_ref, stats_ref):
    """Recompute conv1 on tile+halo, BN1+ReLU, conv2, per-tile BN2 stats."""
    h, nh = pl.program_id(1), pl.num_programs(1)
    th, ww = x_ref.shape[1], x_ref.shape[2]
    cp = y_ref.shape[-1]

    t2 = _halo_row(t2_ref, h == 0)
    t1 = _halo_row(t1_ref, h == 0)
    b1 = _halo_row(b1_ref, h == nh - 1)
    b2 = _halo_row(b2_ref, h == nh - 1)

    # conv1 on TH+2 output rows (the tile plus one halo row of the stage-1
    # activation needed by conv2).  Needs a 2-row halo of x on each side.
    xh = _pad_w(jnp.concatenate([t2, t1, x_ref[0], b1, b2], axis=0))
    acc1 = _conv3x3_k9(xh, w1_ref[...])                          # ((TH+2)*W, Cp) f32

    # BN1 folded to scale/shift + ReLU, then bf16 for the conv2 MXU matmuls.
    a = jnp.maximum(acc1 * sc1_ref[...] + sh1_ref[...], 0.0)
    a = a.astype(jnp.bfloat16).reshape(th + 2, ww, cp)

    # conv2's zero-row padding at the image top/bottom boundary.
    a_top = jnp.where(h == 0, jnp.zeros_like(a[0:1]), a[0:1])
    a_bot = jnp.where(h == nh - 1, jnp.zeros_like(a[th + 1:th + 2]),
                      a[th + 1:th + 2])
    ah = _pad_w(jnp.concatenate([a_top, a[1:th + 1], a_bot], axis=0))
    acc2 = _conv3x3_k3(ah, w2_ref[...])                          # (TH*W, Cp) f32

    y_ref[...] = acc2.astype(y_ref.dtype).reshape(1, th, ww, cp)
    s = jnp.sum(acc2, axis=0, keepdims=True)
    sq = jnp.sum(acc2 * acc2, axis=0, keepdims=True)
    stats_ref[...] = jnp.concatenate([s, sq], axis=0).reshape(1, 1, 2, cp)


def _bnrelu_out_kernel(y_ref, sc_ref, sh_ref, o_ref):
    """Final BN2+ReLU (folded scale/shift) + in-kernel channel un-pad slice."""
    th, ww, cp = y_ref.shape[1], y_ref.shape[2], y_ref.shape[3]
    cout = o_ref.shape[-1]
    y = y_ref[...].astype(jnp.float32).reshape(th * ww, cp)
    o = jnp.maximum(y * sc_ref[...] + sh_ref[...], 0.0)
    o_ref[...] = o[:, :cout].reshape(1, th, ww, cout)


# ---------------------------------------------------------------------------
# pallas_call wrappers (grid = (N, H-tiles), both axes "parallel")
# ---------------------------------------------------------------------------

def _conv1_stats_call(xb, w1k, th, vmem_limit):
    n, hh, ww, cin = xb.shape
    cp = w1k.shape[-1]
    nh = hh // th
    halo = lambda imap: pl.BlockSpec((1, 1, ww, cin), imap)
    return pl.pallas_call(
        _conv1_stats_kernel,
        grid=(n, nh),
        in_specs=[
            pl.BlockSpec((1, th, ww, cin), lambda i, j: (i, j, 0, 0)),
            halo(lambda i, j: (i, jnp.maximum(j * th - 1, 0), 0, 0)),
            halo(lambda i, j: (i, jnp.minimum((j + 1) * th, hh - 1), 0, 0)),
            pl.BlockSpec(w1k.shape, lambda i, j: (0, 0)),
        ],
        out_specs=pl.BlockSpec((1, 1, 2, cp), lambda i, j: (i, j, 0, 0)),
        out_shape=jax.ShapeDtypeStruct((n, nh, 2, cp), jnp.float32),
        compiler_params=pltpu.CompilerParams(
            dimension_semantics=("parallel", "parallel"),
            vmem_limit_bytes=vmem_limit),
    )(xb, xb, xb, w1k)


def _fused_conv_call(xb, w1k, sc1, sh1, w2k, th, vmem_limit):
    n, hh, ww, cin = xb.shape
    cp = w2k.shape[-1]
    nh = hh // th
    halo = lambda imap: pl.BlockSpec((1, 1, ww, cin), imap)
    vec = pl.BlockSpec((1, cp), lambda i, j: (0, 0))
    return pl.pallas_call(
        _fused_conv_kernel,
        grid=(n, nh),
        in_specs=[
            pl.BlockSpec((1, th, ww, cin), lambda i, j: (i, j, 0, 0)),
            halo(lambda i, j: (i, jnp.maximum(j * th - 2, 0), 0, 0)),
            halo(lambda i, j: (i, jnp.maximum(j * th - 1, 0), 0, 0)),
            halo(lambda i, j: (i, jnp.minimum((j + 1) * th, hh - 1), 0, 0)),
            halo(lambda i, j: (i, jnp.minimum((j + 1) * th + 1, hh - 1), 0, 0)),
            pl.BlockSpec(w1k.shape, lambda i, j: (0, 0)),
            vec, vec,
            pl.BlockSpec(w2k.shape, lambda i, j: (0, 0, 0)),
        ],
        out_specs=[
            pl.BlockSpec((1, th, ww, cp), lambda i, j: (i, j, 0, 0)),
            pl.BlockSpec((1, 1, 2, cp), lambda i, j: (i, j, 0, 0)),
        ],
        out_shape=(
            jax.ShapeDtypeStruct((n, hh, ww, cp), jnp.bfloat16),
            jax.ShapeDtypeStruct((n, nh, 2, cp), jnp.float32),
        ),
        compiler_params=pltpu.CompilerParams(
            dimension_semantics=("parallel", "parallel"),
            vmem_limit_bytes=vmem_limit),
    )(xb, xb, xb, xb, xb, w1k, sc1, sh1, w2k)


def _bnrelu_out_call(y2, sc2, sh2, out_ch, th, vmem_limit):
    n, hh, ww, cp = y2.shape
    nh = hh // th
    vec = pl.BlockSpec((1, cp), lambda i, j: (0, 0))
    return pl.pallas_call(
        _bnrelu_out_kernel,
        grid=(n, nh),
        in_specs=[
            pl.BlockSpec((1, th, ww, cp), lambda i, j: (i, j, 0, 0)),
            vec, vec,
        ],
        out_specs=pl.BlockSpec((1, th, ww, out_ch), lambda i, j: (i, j, 0, 0)),
        out_shape=jax.ShapeDtypeStruct((n, hh, ww, out_ch), jnp.float32),
        compiler_params=pltpu.CompilerParams(
            dimension_semantics=("parallel", "parallel"),
            vmem_limit_bytes=vmem_limit),
    )(y2, sc2, sh2)


# ---------------------------------------------------------------------------
# Forward pass
# ---------------------------------------------------------------------------

def _fold_bn(stats, gamma, beta, cnt):
    """Fold training-mode BN (one-pass batch stats) into per-channel scale/shift.

    stats: (N, HT, 2, Cp) per-tile [sum, sum_sq]; tiny glue reduce/derivation.
    NOTE: one-pass variance; for very large N*H*W consider Chan-style merging.
    """
    s = jnp.sum(stats, axis=(0, 1))              # (2, Cp)
    mean = s[0:1] / cnt                          # (1, Cp)
    var = s[1:2] / cnt - mean * mean             # biased variance
    scale = gamma * jax.lax.rsqrt(var + BN_EPS)
    shift = beta - mean * scale
    return scale, shift


def double_conv_forward(x_nchw, params, conv_tile_rows=None, bn_tile_rows=None):
    """Equivalent of double_conv.forward(x), x in NCHW (training-mode BN)."""
    n, _, hh, ww = x_nchw.shape
    cp = params["w2k"].shape[-1]
    cin = x_nchw.shape[1]
    out_ch = params["out_ch"]
    vmem_limit = _vmem_limit_bytes()
    cnt = float(n * hh * ww)

    # NCHW -> NHWC and a single bf16 cast (native MXU input dtype); all conv
    # accumulation and BN statistics stay f32 inside the kernels.
    xb = jnp.transpose(x_nchw, (0, 2, 3, 1)).astype(jnp.bfloat16)

    th = conv_tile_rows if conv_tile_rows is not None else _pick_tile_rows(
        hh, _conv_row_bytes(ww, cin, cp), CONV_TILE_TARGET_BYTES)
    _check_tile(hh, th)
    th3 = bn_tile_rows if bn_tile_rows is not None else _pick_tile_rows(
        hh, _bn_row_bytes(ww, cp, out_ch), BN_TILE_TARGET_BYTES)
    _check_tile(hh, th3)

    # pass 1: conv1 -> per-tile BN1 partial stats only (y1 never hits HBM).
    st1 = _conv1_stats_call(xb, params["w1k"], th, vmem_limit)
    sc1, sh1 = _fold_bn(st1, params["g1"], params["be1"], cnt)

    # pass 2: recompute conv1 on tile+halo rows, BN1+ReLU, conv2, BN2 stats.
    y2, st2 = _fused_conv_call(xb, params["w1k"], sc1, sh1, params["w2k"],
                               th, vmem_limit)
    sc2, sh2 = _fold_bn(st2, params["g2"], params["be2"], cnt)

    # pass 3: BN2 + ReLU, channel un-pad sliced in-kernel (NHWC, out_ch lanes).
    out = _bnrelu_out_call(y2, sc2, sh2, out_ch, th3, vmem_limit)

    # TODO(synk): fold this NHWC->NCHW layout change into the consumer (or the
    # final kernel's out_spec) instead of an XLA transpose pass.
    return jnp.transpose(out, (0, 3, 1, 2))


# ---------------------------------------------------------------------------
# Parameters (PyTorch shapes, converted/padded to the kernel layout)
# ---------------------------------------------------------------------------

def init_params(key, in_ch, out_ch):
    ks = jax.random.split(key, 8)
    w1_oihw = jax.random.normal(ks[0], (out_ch, in_ch, 3, 3), jnp.float32) * 0.2
    w2_oihw = jax.random.normal(ks[1], (out_ch, out_ch, 3, 3), jnp.float32) * 0.2
    b1 = jax.random.normal(ks[2], (out_ch,), jnp.float32) * 0.1
    g1 = 1.0 + jax.random.normal(ks[3], (out_ch,), jnp.float32) * 0.1
    be1 = jax.random.normal(ks[4], (out_ch,), jnp.float32) * 0.1
    b2 = jax.random.normal(ks[5], (out_ch,), jnp.float32) * 0.1
    g2 = 1.0 + jax.random.normal(ks[6], (out_ch,), jnp.float32) * 0.1
    be2 = jax.random.normal(ks[7], (out_ch,), jnp.float32) * 0.1

    cp = _round_up(out_ch, LANE)
    pad_c = lambda v: jnp.pad(v, (0, cp - out_ch)).reshape(1, cp)

    # conv1: OIHW -> (kh, kw, in, out), pad out channels, fold (dy, dx, cin)
    # into a single contraction dim: (9*Cin, Cp), bf16.
    w1_hwio = jnp.transpose(w1_oihw, (2, 3, 1, 0))
    w1k = jnp.pad(w1_hwio, ((0, 0), (0, 0), (0, 0), (0, cp - out_ch)))
    w1k = w1k.reshape(9 * in_ch, cp).astype(jnp.bfloat16)

    # conv2: pad both in/out channels to Cp, fold kw into K: (3, 3*Cp, Cp), bf16.
    w2_hwio = jnp.transpose(w2_oihw, (2, 3, 1, 0))
    w2k = jnp.pad(w2_hwio, ((0, 0), (0, 0), (0, cp - out_ch), (0, cp - out_ch)))
    w2k = w2k.reshape(3, 3 * cp, cp).astype(jnp.bfloat16)

    return {
        "out_ch": out_ch,
        # kernel-layout params (conv biases intentionally omitted: cancelled
        # exactly by training-mode BN mean subtraction; NOT valid in eval mode)
        "w1k": w1k, "w2k": w2k,
        "g1": pad_c(g1), "be1": pad_c(be1),
        "g2": pad_c(g2), "be2": pad_c(be2),
        # raw PyTorch-shaped params for the pure-JAX reference
        "_w1_oihw": w1_oihw, "_w2_oihw": w2_oihw,
        "_b1": b1, "_g1": g1, "_be1": be1,
        "_b2": b2, "_g2": g2, "_be2": be2,
    }


# ---------------------------------------------------------------------------
# Pure-JAX reference (PyTorch semantics, NCHW, f32 everywhere)
# ---------------------------------------------------------------------------

def _reference_stage(x_nchw, w_oihw, b, gamma, beta):
    y = jax.lax.conv_general_dilated(
        x_nchw, w_oihw, window_strides=(1, 1), padding=((1, 1), (1, 1)),
        dimension_numbers=("NCHW", "OIHW", "NCHW"))
    y = y + b[None, :, None, None]
    mean = jnp.mean(y, axis=(0, 2, 3), keepdims=True)
    var = jnp.mean(jnp.square(y - mean), axis=(0, 2, 3), keepdims=True)
    y = (y - mean) * jax.lax.rsqrt(var + BN_EPS)
    y = y * gamma[None, :, None, None] + beta[None, :, None, None]
    return jnp.maximum(y, 0.0)


def reference_forward(x_nchw, p):
    y = _reference_stage(x_nchw, p["_w1_oihw"], p["_b1"], p["_g1"], p["_be1"])
    y = _reference_stage(y, p["_w2_oihw"], p["_b2"], p["_g2"], p["_be2"])
    return y


if __name__ == "__main__":
    key = jax.random.PRNGKey(0)
    kx, kp = jax.random.split(key)

    N, in_ch, out_ch, H, W = 2, 4, 8, 16, 16
    x = jax.random.normal(kx, (N, in_ch, H, W), jnp.float32)   # NCHW like PyTorch
    params = init_params(kp, in_ch, out_ch)

    # conv_tile_rows=8 / bn_tile_rows=8 force 2 H-tiles per image so the halo
    # path is exercised even at this small test size (auto-sizing would pick a
    # whole-image tile here).
    out = jax.block_until_ready(
        double_conv_forward(x, params, conv_tile_rows=8, bn_tile_rows=8))
    ref = jax.block_until_ready(reference_forward(x, params))

    assert out.shape == (N, out_ch, H, W)
    assert bool(jnp.all(jnp.isfinite(out)))
    # bf16 MXU inputs (f32 accumulation) => compare with a bf16-appropriate bound.
    err = float(jnp.max(jnp.abs(out - ref)) /
                jnp.maximum(1.0, jnp.max(jnp.abs(ref))))
    assert err < 5e-2, f"normalized max-abs error {err}"

    print("KERNEL_OK")
</pallas_src>

<mosaic_0001>
module attributes {stable_mosaic.version = 11 : i64} {
  func.func @_conv1_stats_kernel(%arg0: i32, %arg1: i32, %arg2: memref<1x8x16x4xbf16, #tpu.memory_space<vmem>>, %arg3: memref<1x1x16x4xbf16, #tpu.memory_space<vmem>>, %arg4: memref<1x1x16x4xbf16, #tpu.memory_space<vmem>>, %arg5: memref<36x128xbf16, #tpu.memory_space<vmem>>, %arg6: memref<1x1x2x128xf32, #tpu.memory_space<vmem>>) attributes {dimension_semantics = [#tpu.dimension_semantics<parallel>, #tpu.dimension_semantics<parallel>], iteration_bounds = array<i64: 2, 2>, scalar_prefetch = 0 : i64, scratch_operands = 0 : i64, tpu.core_type = #tpu.core_type<tc>, window_params = [{transform_indices = @transform_0, window_bounds = array<i64: 1, 8, 16, 4>}, {transform_indices = @transform_1, window_bounds = array<i64: 1, 1, 16, 4>}, {transform_indices = @transform_2, window_bounds = array<i64: 1, 1, 16, 4>}, {pipeline_mode = #tpu.pipeline_mode<synchronous>, transform_indices = @transform_3, window_bounds = array<i64: 36, 128>}, {transform_indices = @transform_4, window_bounds = array<i64: 1, 1, 2, 128>}]} {
    %c0_i32 = arith.constant 0 : i32
    %0 = arith.cmpi eq, %arg1, %c0_i32 : i32
    %c0 = arith.constant 0 : index
    %c0_0 = arith.constant 0 : index
    %c0_1 = arith.constant 0 : index
    %c0_2 = arith.constant 0 : index
    %1 = vector.load %arg3[%c0, %c0_0, %c0_1, %c0_2] : memref<1x1x16x4xbf16, #tpu.memory_space<vmem>>, vector<1x1x16x4xbf16>
    %2 = vector.shape_cast %1 : vector<1x1x16x4xbf16> to vector<1x16x4xbf16>
    %cst = arith.constant 0.000000e+00 : bf16
    %3 = vector.broadcast %cst : bf16 to vector<1x16x4xbf16>
    %4 = arith.select %0, %3, %2 : vector<1x16x4xbf16>
    %c1_i32 = arith.constant 1 : i32
    %5 = arith.cmpi eq, %arg1, %c1_i32 : i32
    %c0_3 = arith.constant 0 : index
    %c0_4 = arith.constant 0 : index
    %c0_5 = arith.constant 0 : index
    %c0_6 = arith.constant 0 : index
    %6 = vector.load %arg4[%c0_3, %c0_4, %c0_5, %c0_6] : memref<1x1x16x4xbf16, #tpu.memory_space<vmem>>, vector<1x1x16x4xbf16>
    %7 = vector.shape_cast %6 : vector<1x1x16x4xbf16> to vector<1x16x4xbf16>
    %cst_7 = arith.constant 0.000000e+00 : bf16
    %8 = vector.broadcast %cst_7 : bf16 to vector<1x16x4xbf16>
    %9 = arith.select %5, %8, %7 : vector<1x16x4xbf16>
    %c0_8 = arith.constant 0 : index
    %c0_9 = arith.constant 0 : index
    %c0_10 = arith.constant 0 : index
    %c0_11 = arith.constant 0 : index
    %10 = vector.load %arg2[%c0_8, %c0_9, %c0_10, %c0_11] : memref<1x8x16x4xbf16, #tpu.memory_space<vmem>>, vector<1x8x16x4xbf16>
    %11 = vector.shape_cast %10 : vector<1x8x16x4xbf16> to vector<8x16x4xbf16>
    %12 = tpu.concatenate %4, %11, %9 in 0 : vector<1x16x4xbf16>, vector<8x16x4xbf16>, vector<1x16x4xbf16> -> vector<10x16x4xbf16>
    %cst_12 = arith.constant 0.000000e+00 : bf16
    %13 = vector.broadcast %cst_12 : bf16 to vector<10x1x4xbf16>
    %14 = tpu.concatenate %13, %12, %13 in 1 : vector<10x1x4xbf16>, vector<10x16x4xbf16>, vector<10x1x4xbf16> -> vector<10x18x4xbf16>
    %c0_13 = arith.constant 0 : index
    %c0_14 = arith.constant 0 : index
    %15 = vector.load %arg5[%c0_13, %c0_14] : memref<36x128xbf16, #tpu.memory_space<vmem>>, vector<36x128xbf16>
    %16 = vector.extract_strided_slice %14 {offsets = [0, 0, 0], sizes = [8, 16, 4], strides = [1, 1, 1]} : vector<10x18x4xbf16> to vector<8x16x4xbf16>
    %17 = vector.extract_strided_slice %14 {offsets = [0, 1, 0], sizes = [8, 16, 4], strides = [1, 1, 1]} : vector<10x18x4xbf16> to vector<8x16x4xbf16>
    %18 = vector.extract_strided_slice %14 {offsets = [0, 2, 0], sizes = [8, 16, 4], strides = [1, 1, 1]} : vector<10x18x4xbf16> to vector<8x16x4xbf16>
    %19 = vector.extract_strided_slice %14 {offsets = [1, 0, 0], sizes = [8, 16, 4], strides = [1, 1, 1]} : vector<10x18x4xbf16> to vector<8x16x4xbf16>
    %20 = vector.extract_strided_slice %14 {offsets = [1, 1, 0], sizes = [8, 16, 4], strides = [1, 1, 1]} : vector<10x18x4xbf16> to vector<8x16x4xbf16>
    %21 = vector.extract_strided_slice %14 {offsets = [1, 2, 0], sizes = [8, 16, 4], strides = [1, 1, 1]} : vector<10x18x4xbf16> to vector<8x16x4xbf16>
    %22 = vector.extract_strided_slice %14 {offsets = [2, 0, 0], sizes = [8, 16, 4], strides = [1, 1, 1]} : vector<10x18x4xbf16> to vector<8x16x4xbf16>
    %23 = vector.extract_strided_slice %14 {offsets = [2, 1, 0], sizes = [8, 16, 4], strides = [1, 1, 1]} : vector<10x18x4xbf16> to vector<8x16x4xbf16>
    %24 = vector.extract_strided_slice %14 {offsets = [2, 2, 0], sizes = [8, 16, 4], strides = [1, 1, 1]} : vector<10x18x4xbf16> to vector<8x16x4xbf16>
    %25 = tpu.concatenate %16, %17, %18, %19, %20, %21, %22, %23, %24 in 2 : vector<8x16x4xbf16>, vector<8x16x4xbf16>, vector<8x16x4xbf16>, vector<8x16x4xbf16>, vector<8x16x4xbf16>, vector<8x16x4xbf16>, vector<8x16x4xbf16>, vector<8x16x4xbf16>, vector<8x16x4xbf16> -> vector<8x16x36xbf16>
    %26 = vector.shape_cast %25 : vector<8x16x36xbf16> to vector<128x36xbf16>
    %cst_15 = arith.constant dense<0.000000e+00> : vector<128x128xf32>
    %27 = tpu.matmul %26, %15, %cst_15 {dimension_numbers = #tpu.dot_dimension_numbers<[1], [0], [0], [1], [0, 0, 1, 1], [], []>} : vector<128x36xbf16>, vector<36x128xbf16>, vector<128x128xf32> -> vector<128x128xf32>
    %cst_16 = arith.constant dense<0.000000e+00> : vector<128xf32>
    %28 = vector.multi_reduction <add>, %27, %cst_16 [0] : vector<128x128xf32> to vector<128xf32>
    %29 = vector.shape_cast %28 : vector<128xf32> to vector<1x128xf32>
    %30 = arith.mulf %27, %27 : vector<128x128xf32>
    %cst_17 = arith.constant dense<0.000000e+00> : vector<128xf32>
    %31 = vector.multi_reduction <add>, %30, %cst_17 [0] : vector<128x128xf32> to vector<128xf32>
    %32 = vector.shape_cast %31 : vector<128xf32> to vector<1x128xf32>
    %33 = tpu.concatenate %29, %32 in 0 : vector<1x128xf32>, vector<1x128xf32> -> vector<2x128xf32>
    %34 = vector.shape_cast %33 : vector<2x128xf32> to vector<1x1x2x128xf32>
    %c0_18 = arith.constant 0 : index
    %c0_19 = arith.constant 0 : index
    %c0_20 = arith.constant 0 : index
    %c0_21 = arith.constant 0 : index
    %35 = vector.load %arg6[%c0_18, %c0_19, %c0_20, %c0_21] : memref<1x1x2x128xf32, #tpu.memory_space<vmem>>, vector<1x1x2x128xf32>
    tpu.vector_store %arg6[%c0_18, %c0_19, %c0_20, %c0_21], %34 {strides = array<i32>} : memref<1x1x2x128xf32, #tpu.memory_space<vmem>>, vector<1x1x2x128xf32>,
    return
  }
  func.func @transform_0(%arg0: i32, %arg1: i32) -> (i32, i32, i32, i32) {
    %c0_i32 = arith.constant 0 : i32
    %c0_i32_0 = arith.constant 0 : i32
    %c0_i32_1 = arith.constant 0 : i32
    return %arg0, %arg1, %c0_i32, %c0_i32_0 : i32, i32, i32, i32
  }
  func.func @transform_1(%arg0: i32, %arg1: i32) -> (i32, i32, i32, i32) {
    %c8_i32 = arith.constant 8 : i32
    %0 = arith.muli %arg1, %c8_i32 : i32
    %c1_i32 = arith.constant 1 : i32
    %1 = arith.subi %0, %c1_i32 : i32
    %c0_i32 = arith.constant 0 : i32
    %2 = arith.maxsi %1, %c0_i32 : i32
    %c0_i32_0 = arith.constant 0 : i32
    %c0_i32_1 = arith.constant 0 : i32
    %c0_i32_2 = arith.constant 0 : i32
    return %arg0, %2, %c0_i32_0, %c0_i32_1 : i32, i32, i32, i32
  }
  func.func @transform_2(%arg0: i32, %arg1: i32) -> (i32, i32, i32, i32) {
    %c1_i32 = arith.constant 1 : i32
    %0 = arith.addi %arg1, %c1_i32 : i32
    %c8_i32 = arith.constant 8 : i32
    %1 = arith.muli %0, %c8_i32 : i32
    %c15_i32 = arith.constant 15 : i32
    %2 = arith.minsi %1, %c15_i32 : i32
    %c0_i32 = arith.constant 0 : i32
    %c0_i32_0 = arith.constant 0 : i32
    %c0_i32_1 = arith.constant 0 : i32
    return %arg0, %2, %c0_i32, %c0_i32_0 : i32, i32, i32, i32
  }
  func.func @transform_3(%arg0: i32, %arg1: i32) -> (i32, i32) {
    %c0_i32 = arith.constant 0 : i32
    %c0_i32_0 = arith.constant 0 : i32
    %c0_i32_1 = arith.constant 0 : i32
    return %c0_i32, %c0_i32_0 : i32, i32
  }
  func.func @transform_4(%arg0: i32, %arg1: i32) -> (i32, i32, i32, i32) {
    %c0_i32 = arith.constant 0 : i32
    %c0_i32_0 = arith.constant 0 : i32
    %c0_i32_1 = arith.constant 0 : i32
    return %arg0, %arg1, %c0_i32, %c0_i32_0 : i32, i32, i32, i32
  }
}

</mosaic_0001>

<llo_original>
// kernel: tpu_custom_call.1
$region0: #{tpu_custom_call.1}
  #allocation0 [shape = 'u32[]', space=smem, size = 0x4, offset = 0x4, fixed_abs, tag = 'smem constant byte address 0x4 - core index']
  #allocation1 [shape = 'u32[144,128]{1,0:T(1,128)}', space=vmem, size = 0x12000, scoped, tag = 'internal scratch']
  %s0 = inlined_call_operand.vmem [shape: bf16[2,16,16,4], index: 0, kind: input, shape index: {}]
  %s1 = inlined_call_operand.vmem [shape: bf16[2,16,16,4], index: 1, kind: input, shape index: {}]
  %s2 = inlined_call_operand.vmem [shape: bf16[2,16,16,4], index: 2, kind: input, shape index: {}]
  %s3 = inlined_call_operand.vmem [shape: bf16[36,128], index: 3, kind: input, shape index: {}]
  %s4 = inlined_call_operand.hbm [shape: f32[2,2,2,128], index: 4, kind: output, shape index: {}]
  %s5 = sld [smem:[#allocation0]]
  $region49: #{tpu_custom_call.1} parent=0
    _
  %s7 = ssub.s32 1, %s5
  %s8 = scalar_select 0, %s7, %s5
  $region1: #{tpu_custom_call.1} parent=0
    #allocation2 [shape = 'u8[2048]{0}', space=vmem, size = 0x800, scoped, tag = 'output window, operand 0']
    #allocation3 [shape = 's32[2]{0}', space=sflag, size = 0x8, scoped, tag = 'scoped memory for tpu_custom_call.1']
    %9 = vsyncpa [#allocation3], 0
    %s10 = scalar_lea.sflag [#allocation3], 1
    %11 = vsyncpa %s10, 0
    loop: start=0, step=1, limit=6
    $region2: #{tpu_custom_call.1} parent=1 // loop_pre_header
      _
    $region3: #{tpu_custom_call.1} parent=1 // loop_header
      %s13 = sphi 0, %s17
      %p14 = scmp.ge.s32.totalorder %s13, 6
      %s20 = sphi 0, %s32
      %s21 = sphi 0, %s28
      %s22 = sphi 0, %s20
      %s23 = sphi 0, %s21
      %s24 = sphi 0, %s22
      %s25 = sphi 0, %s23
      %s37 = sphi 0, %s39
      %s40 = sphi 0, %s37
      %s41 = sphi 0, %s40
      %s57 = sphi 0, %s41
      %s73 = sphi 0, %s75
      %s76 = sphi 0, %s73
      %s77 = sphi 0, %s76
      %s93 = sphi 0, %s77
      %s109 = sphi 0, %s111
      %s112 = sphi 0, %s109
      %s113 = sphi 0, %s112
      %s129 = sphi 0, %s113
      %s133 = sphi 0, %s133
      %s135 = sphi 0, %s133
      %s136 = sphi 0, %s135
      %s150 = sphi 0, %s136
      %s158 = sphi 0, %s160
      %s161 = sphi 0, %s158
      %s162 = sphi 0, %s161
      %s178 = sphi 0, %s162
    $region4: #{tpu_custom_call.1} parent=1 // loop_header_branch
      %16 = sbr.rel (%p14) target = $region8
    $region5: #{tpu_custom_call.1} parent=1 // loop_body
      %s18 = ssub.s32 %s13, 1
      %s19 = ssub.s32 %s13, 2
      %s26 = sadd.s32 1, %s21
      %p27 = scmp.ge.s32.totalorder %s26, 2
      %s28 = scalar_select %p27, 0, %s26
      %s29 = sadd.s32 1, %s20
      %s30 = scalar_select %p27, %s29, %s20
      %p31 = scmp.ge.s32.totalorder %s30, 2
      %s32 = scalar_select %p31, 0, %s30
      %s33 = ssub.s32 %s20, %s32
      %s34 = ssub.s32 %s21, %s28
      %s35 = sor.u32 %s33, %s34
      %p36 = scmp.eq.s32.totalorder %s35, 0
      %s38 = sadd.s32 %s37, 1
      %s39 = scalar_select %p36, %s37, %s38
      %p42 = pneg %p36
      %p43 = scmp.eq.s32.totalorder %s13, 3
      %p44 = por %p42, %p43
      %p45 = scmp.ne.s32.totalorder %s37, %s40
      %p46 = scmp.eq.s32.totalorder %s13, 0
      %p47 = por %p45, %p46
      %p48 = scmp.ne.s32.totalorder %s37, %s40
      %p49 = scmp.eq.s32.totalorder %s18, 3
      %p50 = por %p48, %p49
      %p51 = scmp.ne.s32.totalorder %s40, %s41
      %p52 = scmp.eq.s32.totalorder %s18, 0
      %p53 = por %p51, %p52
      %p54 = scmp.ne.s32.totalorder %s40, %s41
      %p55 = scmp.eq.s32.totalorder %s19, 3
      %p56 = por %p54, %p55
      %p58 = scmp.ne.s32.totalorder %s41, %s57
      %p59 = scmp.eq.s32.totalorder %s19, 0
      %p60 = por %p58, %p59
      %s61 = smul.u32 %s21, 8
      %s62 = ssub.s32 %s61, 1
      %p63 = scmp.gt.s32.totalorder %s62, 0
      %s64 = scalar_select %p63, %s62, 0
      %s65 = smul.u32 %s28, 8
      %s66 = ssub.s32 %s65, 1
      %p67 = scmp.gt.s32.totalorder %s66, 0
      %s68 = scalar_select %p67, %s66, 0
      %s69 = ssub.s32 %s20, %s32
      %s70 = ssub.s32 %s64, %s68
      %s71 = sor.u32 %s69, %s70
      %p72 = scmp.eq.s32.totalorder %s71, 0
      %s74 = sadd.s32 %s73, 1
      %s75 = scalar_select %p72, %s73, %s74
      %p78 = pneg %p72
      %p79 = scmp.eq.s32.totalorder %s13, 3
      %p80 = por %p78, %p79
      %p81 = scmp.ne.s32.totalorder %s73, %s76
      %p82 = scmp.eq.s32.totalorder %s13, 0
      %p83 = por %p81, %p82
      %p84 = scmp.ne.s32.totalorder %s73, %s76
      %p85 = scmp.eq.s32.totalorder %s18, 3
      %p86 = por %p84, %p85
      %p87 = scmp.ne.s32.totalorder %s76, %s77
      %p88 = scmp.eq.s32.totalorder %s18, 0
      %p89 = por %p87, %p88
      %p90 = scmp.ne.s32.totalorder %s76, %s77
      %p91 = scmp.eq.s32.totalorder %s19, 3
      %p92 = por %p90, %p91
      %p94 = scmp.ne.s32.totalorder %s77, %s93
      %p95 = scmp.eq.s32.totalorder %s19, 0
      %p96 = por %p94, %p95
      %s97 = sadd.s32 %s21, 1
      %s98 = smul.u32 %s97, 8
      %p99 = scmp.lt.s32.totalorder %s98, 15
      %s100 = scalar_select %p99, %s98, 15
      %s101 = sadd.s32 %s28, 1
      %s102 = smul.u32 %s101, 8
      %p103 = scmp.lt.s32.totalorder %s102, 15
      %s104 = scalar_select %p103, %s102, 15
      %s105 = ssub.s32 %s20, %s32
      %s106 = ssub.s32 %s100, %s104
      %s107 = sor.u32 %s105, %s106
      %p108 = scmp.eq.s32.totalorder %s107, 0
      %s110 = sadd.s32 %s109, 1
      %s111 = scalar_select %p108, %s109, %s110
      %p114 = pneg %p108
      %p115 = scmp.eq.s32.totalorder %s13, 3
      %p116 = por %p114, %p115
      %p117 = scmp.ne.s32.totalorder %s109, %s112
      %p118 = scmp.eq.s32.totalorder %s13, 0
      %p119 = por %p117, %p118
      %p120 = scmp.ne.s32.totalorder %s109, %s112
      %p121 = scmp.eq.s32.totalorder %s18, 3
      %p122 = por %p120, %p121
      %p123 = scmp.ne.s32.totalorder %s112, %s113
      %p124 = scmp.eq.s32.totalorder %s18, 0
      %p125 = por %p123, %p124
      %p126 = scmp.ne.s32.totalorder %s112, %s113
      %p127 = scmp.eq.s32.totalorder %s19, 3
      %p128 = por %p126, %p127
      %p130 = scmp.ne.s32.totalorder %s113, %s129
      %p131 = scmp.eq.s32.totalorder %s19, 0
      %p132 = por %p130, %p131
      %s134 = sadd.s32 %s133, 1
      %p137 = scmp.eq.s32.totalorder %s13, 3
      %p138 = scmp.ne.s32.totalorder %s133, %s135
      %p139 = scmp.eq.s32.totalorder %s13, 0
      %p140 = por %p138, %p139
      %p141 = scmp.ne.s32.totalorder %s133, %s135
      %p142 = scmp.eq.s32.totalorder %s18, 3
      %p143 = por %p141, %p142
      %p144 = scmp.ne.s32.totalorder %s135, %s136
      %p145 = scmp.eq.s32.totalorder %s18, 0
      %p146 = por %p144, %p145
      %p147 = scmp.ne.s32.totalorder %s135, %s136
      %p148 = scmp.eq.s32.totalorder %s19, 3
      %p149 = por %p147, %p148
      %p151 = scmp.ne.s32.totalorder %s136, %s150
      %p152 = scmp.eq.s32.totalorder %s19, 0
      %p153 = por %p151, %p152
      %s154 = ssub.s32 %s20, %s32
      %s155 = ssub.s32 %s21, %s28
      %s156 = sor.u32 %s154, %s155
      %p157 = scmp.eq.s32.totalorder %s156, 0
      %s159 = sadd.s32 %s158, 1
      %s160 = scalar_select %p157, %s158, %s159
      %p163 = pneg %p157
      %p164 = scmp.eq.s32.totalorder %s13, 3
      %p165 = por %p163, %p164
      %p166 = scmp.ne.s32.totalorder %s158, %s161
      %p167 = scmp.eq.s32.totalorder %s13, 0
      %p168 = por %p166, %p167
      %p169 = scmp.ne.s32.totalorder %s158, %s161
      %p170 = scmp.eq.s32.totalorder %s18, 3
      %p171 = por %p169, %p170
      %p172 = scmp.ne.s32.totalorder %s161, %s162
      %p173 = scmp.eq.s32.totalorder %s18, 0
      %p174 = por %p172, %p173
      %p175 = scmp.ne.s32.totalorder %s161, %s162
      %p176 = scmp.eq.s32.totalorder %s19, 3
      %p177 = por %p175, %p176
      %p179 = scmp.ne.s32.totalorder %s162, %s178
      %p180 = scmp.eq.s32.totalorder %s19, 0
      %p181 = por %p179, %p180
      %p182 = scmp.le.s32.totalorder 1, %s13
      %p183 = scmp.lt.s32.totalorder %s13, 5
      %p184 = pnand %p182, %p183
      %p185 = pneg %p184
      // Predicated region
      $region9: #{tpu_custom_call.1} parent=5 // pred_check
        _
      $region10: #{tpu_custom_call.1} parent=5 // pred_check_branch
        %187 = sbr.rel (%p184) target = $region12
      $region11: #{tpu_custom_call.1} parent=5 // pred_region
        %s188 = ssub.s32 %s13, 1
        // Predicated region
        $region13: #{tpu_custom_call.1} parent=11 // pred_check
          %p189 = pneg %p146
        $region14: #{tpu_custom_call.1} parent=11 // pred_check_branch
          %191 = sbr.rel (%p189) target = $region16
        $region15: #{tpu_custom_call.1} parent=11 // pred_region
          _
        $region16: #{tpu_custom_call.1} parent=11 // pred_fallthru
          _
      $region12: #{tpu_custom_call.1} parent=5 // pred_fallthru
        _
      %p192 = scmp.lt.s32.totalorder %s13, 4
      // Predicated region
      $region17: #{tpu_custom_call.1} parent=5 // pred_check
        %p193 = pneg %p192
      $region18: #{tpu_custom_call.1} parent=5 // pred_check_branch
        %195 = sbr.rel (%p193) target = $region20
      $region19: #{tpu_custom_call.1} parent=5 // pred_region
        // Predicated region
        $region21: #{tpu_custom_call.1} parent=19 // pred_check
          %p196 = pneg %p47
        $region22: #{tpu_custom_call.1} parent=19 // pred_check_branch
          %198 = sbr.rel (%p196) target = $region24
        $region23: #{tpu_custom_call.1} parent=19 // pred_region
          %s199 = smul.u32 8, %s21
          %p200 = scmp.lt.s32.totalorder %s20, 1
          %s201 = scalar_select %p200, %s20, 1
          %p202 = scmp.lt.s32.totalorder %s199, 15
          %s203 = scalar_select %p202, %s199, 15
          %s204 = smul.addr %s203, 2
          %s205 = smul.addr %s201, 32
          %s206 = sadd.s32 %s204, %s205
          %s207 = smul.addr %s206, 4
          %s208 = scalar_lea.vmem %s0, %s207
          %s209 = smul.u32 8, %s21
        $region24: #{tpu_custom_call.1} parent=19 // pred_fallthru
          _
        // Predicated region
        $region25: #{tpu_custom_call.1} parent=19 // pred_check
          %p210 = pneg %p83
        $region26: #{tpu_custom_call.1} parent=19 // pred_check_branch
          %212 = sbr.rel (%p210) target = $region28
        $region27: #{tpu_custom_call.1} parent=19 // pred_region
          %s213 = smul.u32 %s21, 8
          %s214 = ssub.s32 %s213, 1
          %p215 = scmp.gt.s32.totalorder %s214, 0
          %s216 = scalar_select %p215, %s214, 0
          %p217 = scmp.lt.s32.totalorder %s20, 1
          %s218 = scalar_select %p217, %s20, 1
          %p219 = scmp.lt.s32.totalorder %s216, 15
          %s220 = scalar_select %p219, %s216, 15
          %s221 = smul.addr %s220, 2
          %s222 = smul.addr %s218, 32
          %s223 = sadd.s32 %s221, %s222
          %s224 = smul.addr %s223, 4
          %s225 = scalar_lea.vmem %s1, %s224
          %s226 = smul.u32 %s21, 8
          %s227 = ssub.s32 %s226, 1
          %p228 = scmp.gt.s32.totalorder %s227, 0
          %s229 = scalar_select %p228, %s227, 0
        $region28: #{tpu_custom_call.1} parent=19 // pred_fallthru
          _
        // Predicated region
        $region29: #{tpu_custom_call.1} parent=19 // pred_check
          %p230 = pneg %p119
        $region30: #{tpu_custom_call.1} parent=19 // pred_check_branch
          %232 = sbr.rel (%p230) target = $region32
        $region31: #{tpu_custom_call.1} parent=19 // pred_region
          %s233 = sadd.s32 %s21, 1
          %s234 = smul.u32 %s233, 8
          %p235 = scmp.lt.s32.totalorder %s234, 15
          %s236 = scalar_select %p235, %s234, 15
          %p237 = scmp.lt.s32.totalorder %s20, 1
          %s238 = scalar_select %p237, %s20, 1
          %p239 = scmp.lt.s32.totalorder %s236, 15
          %s240 = scalar_select %p239, %s236, 15
          %s241 = smul.addr %s240, 2
          %s242 = smul.addr %s238, 32
          %s243 = sadd.s32 %s241, %s242
          %s244 = smul.addr %s243, 4
          %s245 = scalar_lea.vmem %s2, %s244
          %s246 = sadd.s32 %s21, 1
          %s247 = smul.u32 %s246, 8
          %p248 = scmp.lt.s32.totalorder %s247, 15
          %s249 = scalar_select %p248, %s247, 15
        $region32: #{tpu_custom_call.1} parent=19 // pred_fallthru
          _
      $region20: #{tpu_custom_call.1} parent=5 // pred_fallthru
        _
      %p250 = scmp.le.s32.totalorder 1, %s13
      %p251 = scmp.lt.s32.totalorder %s13, 5
      %p252 = pnand %p250, %p251
      %p253 = pneg %p252
      // Predicated region
      $region33: #{tpu_custom_call.1} parent=5 // pred_check
        _
      $region34: #{tpu_custom_call.1} parent=5 // pred_check_branch
        %255 = sbr.rel (%p252) target = $region36
      $region35: #{tpu_custom_call.1} parent=5 // pred_region
        %s256 = ssub.s32 %s13, 1
        %s257 = smul.u32 8, %s23
        %p258 = scmp.lt.s32.totalorder %s22, 1
        %s259 = scalar_select %p258, %s22, 1
        %p260 = scmp.lt.s32.totalorder %s257, 15
        %s261 = scalar_select %p260, %s257, 15
        %s262 = smul.addr %s261, 2
        %s263 = smul.addr %s259, 32
        %s264 = sadd.s32 %s262, %s263
        %s265 = smul.addr %s264, 4
        %s266 = scalar_lea.vmem %s0, %s265
        %p267 = pneg %p53
        %p268 = pneg %p50
        %s269 = smul.u32 %s23, 8
        %s270 = ssub.s32 %s269, 1
        %p271 = scmp.gt.s32.totalorder %s270, 0
        %s272 = scalar_select %p271, %s270, 0
        %p273 = scmp.lt.s32.totalorder %s22, 1
        %s274 = scalar_select %p273, %s22, 1
        %p275 = scmp.lt.s32.totalorder %s272, 15
        %s276 = scalar_select %p275, %s272, 15
        %s277 = smul.addr %s276, 2
        %s278 = smul.addr %s274, 32
        %s279 = sadd.s32 %s277, %s278
        %s280 = smul.addr %s279, 4
        %s281 = scalar_lea.vmem %s1, %s280
        %p282 = pneg %p89
        %p283 = pneg %p86
        %s284 = sadd.s32 %s23, 1
        %s285 = smul.u32 %s284, 8
        %p286 = scmp.lt.s32.totalorder %s285, 15
        %s287 = scalar_select %p286, %s285, 15
        %p288 = scmp.lt.s32.totalorder %s22, 1
        %s289 = scalar_select %p288, %s22, 1
        %p290 = scmp.lt.s32.totalorder %s287, 15
        %s291 = scalar_select %p290, %s287, 15
        %s292 = smul.addr %s291, 2
        %s293 = smul.addr %s289, 32
        %s294 = sadd.s32 %s292, %s293
        %s295 = smul.addr %s294, 4
        %s296 = scalar_lea.vmem %s2, %s295
        %p297 = pneg %p125
        %p298 = pneg %p122
        %p299 = pneg %p146
        %p300 = pneg %p143
        %p301 = pneg %p174
        %p302 = pneg %p171
        %s303 = sand.u32 %s161, 1
        %s304 = scalar_lea.sflag [#allocation3], %s303
        %s305 = sand.u32 %s161, 1
        %s306 = smul.addr %s305, 2
        %s307 = scalar_lea.vmem [#allocation2], %s306
        %s308 = smul.u32 8, %s23
        %p309 = scmp.lt.s32.totalorder %s22, 1
        %s310 = scalar_select %p309, %s22, 1
        %p311 = scmp.lt.s32.totalorder %s308, 15
        %s312 = scalar_select %p311, %s308, 15
        %s313 = smul.addr %s312, 2
        %s314 = smul.addr %s310, 32
        %s315 = sadd.s32 %s313, %s314
        %s316 = smul.addr %s315, 4
        %s317 = scalar_lea.vmem %s0, %s316
        %s318 = smul.u32 8, %s23
        %s319 = smul.u32 %s23, 8
        %s320 = ssub.s32 %s319, 1
        %p321 = scmp.gt.s32.totalorder %s320, 0
        %s322 = scalar_select %p321, %s320, 0
        %p323 = scmp.lt.s32.totalorder %s22, 1
        %s324 = scalar_select %p323, %s22, 1
        %p325 = scmp.lt.s32.totalorder %s322, 15
        %s326 = scalar_select %p325, %s322, 15
        %s327 = smul.addr %s326, 2
        %s328 = smul.addr %s324, 32
        %s329 = sadd.s32 %s327, %s328
        %s330 = smul.addr %s329, 4
        %s331 = scalar_lea.vmem %s1, %s330
        %s332 = smul.u32 %s23, 8
        %s333 = ssub.s32 %s332, 1
        %p334 = scmp.gt.s32.totalorder %s333, 0
        %s335 = scalar_select %p334, %s333, 0
        %s336 = sadd.s32 %s23, 1
        %s337 = smul.u32 %s336, 8
        %p338 = scmp.lt.s32.totalorder %s337, 15
        %s339 = scalar_select %p338, %s337, 15
        %p340 = scmp.lt.s32.totalorder %s22, 1
        %s341 = scalar_select %p340, %s22, 1
        %p342 = scmp.lt.s32.totalorder %s339, 15
        %s343 = scalar_select %p342, %s339, 15
        %s344 = smul.addr %s343, 2
        %s345 = smul.addr %s341, 32
        %s346 = sadd.s32 %s344, %s345
        %s347 = smul.addr %s346, 4
        %s348 = scalar_lea.vmem %s2, %s347
        %s349 = sadd.s32 %s23, 1
        %s350 = smul.u32 %s349, 8
        %p351 = scmp.lt.s32.totalorder %s350, 15
        %s352 = scalar_select %p351, %s350, 15
        %p354 = scmp.eq.s32.totalorder %s23, 0
        %v355 = vld [vmem:[%s331] sm:$0xf]
        %v356 = vld [vmem:[%s331 + $0x4] sm:$0xf]
        %s357 = scalar_select %p354, 1, 0
        %v358 = vstv %s357
        %vm359 = vcmp.eq.s32.totalorder %v358, 1
        %v360 = vsel %vm359, 0, %v355
        %v361 = vsel %vm359, 0, %v356
        %p362 = scmp.eq.s32.totalorder %s23, 1
        %v363 = vld [vmem:[%s348] sm:$0xf]
        %v364 = vld [vmem:[%s348 + $0x4] sm:$0xf]
        %s365 = scalar_select %p362, 1, 0
        %v366 = vstv %s365
        %vm367 = vcmp.eq.s32.totalorder %v366, 1
        %v368 = vsel %vm367, 0, %v363
        %v369 = vsel %vm367, 0, %v364
        %v370 = vld [vmem:[%s317] sm:$0xf]
        %v371 = vld [vmem:[%s317 + $0x4] sm:$0xf]
        %v372 = vld [vmem:[%s317 + $0x8] sm:$0xf]
        %v373 = vld [vmem:[%s317 + $0xc] sm:$0xf]
        %v374 = vld [vmem:[%s317 + $0x10] sm:$0xf]
        %v375 = vld [vmem:[%s317 + $0x14] sm:$0xf]
        %v376 = vld [vmem:[%s317 + $0x18] sm:$0xf]
        %v377 = vld [vmem:[%s317 + $0x1c] sm:$0xf]
        %v378 = vld [vmem:[%s317 + $0x20] sm:$0xf]
        %v379 = vld [vmem:[%s317 + $0x24] sm:$0xf]
        %v380 = vld [vmem:[%s317 + $0x28] sm:$0xf]
        %v381 = vld [vmem:[%s317 + $0x2c] sm:$0xf]
        %v382 = vld [vmem:[%s317 + $0x30] sm:$0xf]
        %v383 = vld [vmem:[%s317 + $0x34] sm:$0xf]
        %v384 = vld [vmem:[%s317 + $0x38] sm:$0xf]
        %v385 = vld [vmem:[%s317 + $0x3c] sm:$0xf]
        %v406 = vunpack.c.l.b16 %v360
        %v407 = vunpack.c.l.b16 %v361
        %v408 = vunpack.c.l.b16 %v370
        %v409 = vunpack.c.l.b16 %v371
        %v410 = vunpack.c.l.b16 %v372
        %v411 = vunpack.c.l.b16 %v373
        %v412 = vunpack.c.l.b16 %v374
        %v413 = vunpack.c.l.b16 %v375
        %v414 = vunpack.c.l.b16 %v376
        %v415 = vunpack.c.l.b16 %v377
        %v416 = vunpack.c.l.b16 %v378
        %v417 = vunpack.c.l.b16 %v379
        %v418 = vunpack.c.l.b16 %v380
        %v419 = vunpack.c.l.b16 %v381
        %v420 = vunpack.c.l.b16 %v382
        %v421 = vunpack.c.l.b16 %v383
        %v422 = vunpack.c.l.b16 %v384
        %v423 = vunpack.c.l.b16 %v385
        %v424 = vunpack.c.l.b16 %v368
        %v425 = vunpack.c.l.b16 %v369
        %v426 = vpack.c.b16 %v407, %v406
        %v427 = vpack.c.b16 %v409, %v408
        %v428 = vpack.c.b16 %v411, %v410
        %v429 = vpack.c.b16 %v413, %v412
        %v430 = vpack.c.b16 %v415, %v414
        %v431 = vpack.c.b16 %v417, %v416
        %v432 = vpack.c.b16 %v419, %v418
        %v433 = vpack.c.b16 %v421, %v420
        %v434 = vpack.c.b16 %v423, %v422
        %v435 = vpack.c.b16 %v425, %v424
        %v437 = vshrl.u32 %v426, 16
        %v439 = vrot.slane %v437, 7
        %v440 = vshll.u32 %v426, 16
        %v442 = vor.u32 %v439, %v440
        %v444 = vshrl.u32 %v427, 16
        %v446 = vrot.slane %v444, 7
        %v447 = vshll.u32 %v427, 16
        %v449 = vor.u32 %v446, %v447
        %v451 = vshrl.u32 %v428, 16
        %v453 = vrot.slane %v451, 7
        %v454 = vshll.u32 %v428, 16
        %v456 = vor.u32 %v453, %v454
        %v458 = vshrl.u32 %v429, 16
        %v460 = vrot.slane %v458, 7
        %v461 = vshll.u32 %v429, 16
        %v463 = vor.u32 %v460, %v461
        %v465 = vshrl.u32 %v430, 16
        %v467 = vrot.slane %v465, 7
        %v468 = vshll.u32 %v430, 16
        %v470 = vor.u32 %v467, %v468
        %v472 = vshrl.u32 %v431, 16
        %v474 = vrot.slane %v472, 7
        %v475 = vshll.u32 %v431, 16
        %v477 = vor.u32 %v474, %v475
        %v479 = vshrl.u32 %v432, 16
        %v481 = vrot.slane %v479, 7
        %v482 = vshll.u32 %v432, 16
        %v484 = vor.u32 %v481, %v482
        %v486 = vshrl.u32 %v433, 16
        %v488 = vrot.slane %v486, 7
        %v489 = vshll.u32 %v433, 16
        %v491 = vor.u32 %v488, %v489
        %v493 = vshrl.u32 %v434, 16
        %v495 = vrot.slane %v493, 7
        %v496 = vshll.u32 %v434, 16
        %v498 = vor.u32 %v495, %v496
        %v500 = vshrl.u32 %v435, 16
        %v502 = vrot.slane %v500, 7
        %v503 = vshll.u32 %v435, 16
        %v505 = vor.u32 %v502, %v503
        %vm526 = vcmask 1040384
        %vm527 = vsmask.f32 256
        %vm528 = vmand %vm526, %vm527
        %v529 = vsel %vm528, 0, %v442
        %v530 = vsel %vm528, 0, %v449
        %v531 = vsel %vm528, 0, %v456
        %v532 = vsel %vm528, 0, %v463
        %v533 = vsel %vm528, 0, %v470
        %v534 = vsel %vm528, 0, %v477
        %v535 = vsel %vm528, 0, %v484
        %v536 = vsel %vm528, 0, %v491
        %v537 = vsel %vm528, 0, %v498
        %v538 = vsel %vm528, 0, %v505
        %v539 = vsel %vm528, %v439, 0
        %v540 = vsel %vm528, %v446, 0
        %v541 = vsel %vm528, %v453, 0
        %v542 = vsel %vm528, %v460, 0
        %v543 = vsel %vm528, %v467, 0
        %v544 = vsel %vm528, %v474, 0
        %v545 = vsel %vm528, %v481, 0
        %v546 = vsel %vm528, %v488, 0
        %v547 = vsel %vm528, %v495, 0
        %v548 = vsel %vm528, %v502, 0
        %v549 = vld [vmem:[%s3] sm:$0xf]
        %v550 = vld [vmem:[%s3 + $0x4] sm:$0xf]
        %v551 = vld [vmem:[%s3 + $0x8] sm:$0xf]
        %v552 = vld [vmem:[%s3 + $0xc] sm:$0xf]
        %v553 = vld [vmem:[%s3 + $0x10] sm:$0x3]
        %vm554 = vsmask.f32 7424
        %v556 = vshrl.u32 %v529, 16
        %v558 = vshll.u32 %v529, 16
        %v560 = vrot.slane %v558, 1
        %v561 = vor.u32 %v556, %v560
        %v563 = vshll.u32 %v539, 16
        %v565 = vrot.slane %v563, 1
        %v566 = vsel %vm554, %v561, %v565
        %v568 = vshrl.u32 %v530, 16
        %v570 = vshll.u32 %v530, 16
        %v572 = vrot.slane %v570, 1
        %v573 = vor.u32 %v568, %v572
        %v575 = vshll.u32 %v540, 16
        %v577 = vrot.slane %v575, 1
        %v578 = vsel %vm554, %v573, %v577
        %v580 = vshrl.u32 %v531, 16
        %v582 = vshll.u32 %v531, 16
        %v584 = vrot.slane %v582, 1
        %v585 = vor.u32 %v580, %v584
        %v587 = vshll.u32 %v541, 16
        %v589 = vrot.slane %v587, 1
        %v590 = vsel %vm554, %v585, %v589
        %v592 = vshrl.u32 %v532, 16
        %v594 = vshll.u32 %v532, 16
        %v596 = vrot.slane %v594, 1
        %v597 = vor.u32 %v592, %v596
        %v599 = vshll.u32 %v542, 16
        %v601 = vrot.slane %v599, 1
        %v602 = vsel %vm554, %v597, %v601
        %v604 = vshrl.u32 %v533, 16
        %v606 = vshll.u32 %v533, 16
        %v608 = vrot.slane %v606, 1
        %v609 = vor.u32 %v604, %v608
        %v611 = vshll.u32 %v543, 16
        %v613 = vrot.slane %v611, 1
        %v614 = vsel %vm554, %v609, %v613
        %v616 = vshrl.u32 %v534, 16
        %v618 = vshll.u32 %v534, 16
        %v620 = vrot.slane %v618, 1
        %v621 = vor.u32 %v616, %v620
        %v623 = vshll.u32 %v544, 16
        %v625 = vrot.slane %v623, 1
        %v626 = vsel %vm554, %v621, %v625
        %v628 = vshrl.u32 %v535, 16
        %v630 = vshll.u32 %v535, 16
        %v632 = vrot.slane %v630, 1
        %v633 = vor.u32 %v628, %v632
        %v635 = vshll.u32 %v545, 16
        %v637 = vrot.slane %v635, 1
        %v638 = vsel %vm554, %v633, %v637
        %v640 = vshrl.u32 %v536, 16
        %v642 = vshll.u32 %v536, 16
        %v644 = vrot.slane %v642, 1
        %v645 = vor.u32 %v640, %v644
        %v647 = vshll.u32 %v546, 16
        %v649 = vrot.slane %v647, 1
        %v650 = vsel %vm554, %v645, %v649
        %651 = vrot.lane.b32.xlu0 %v566, 4
        %v652 = vpop.permute.xlu0 %651
        %653 = vrot.lane.b32.xlu0 %v578, 4
        %v654 = vpop.permute.xlu0 %653
        %655 = vrot.lane.b32.xlu0 %v590, 4
        %v656 = vpop.permute.xlu0 %655
        %657 = vrot.lane.b32.xlu0 %v602, 4
        %v658 = vpop.permute.xlu0 %657
        %659 = vrot.lane.b32.xlu0 %v614, 4
        %v660 = vpop.permute.xlu0 %659
        %661 = vrot.lane.b32.xlu0 %v626, 4
        %v662 = vpop.permute.xlu0 %661
        %663 = vrot.lane.b32.xlu0 %v638, 4
        %v664 = vpop.permute.xlu0 %663
        %665 = vrot.lane.b32.xlu0 %v650, 4
        %v666 = vpop.permute.xlu0 %665
        %vm683 = vcmask 1046528
        %v684 = vrot.slane %v529, 1
        %v685 = vrot.slane %v539, 1
        %v686 = vsel %vm683, %v684, %v685
        %v687 = vrot.slane %v530, 1
        %v688 = vrot.slane %v540, 1
        %v689 = vsel %vm683, %v687, %v688
        %v690 = vrot.slane %v531, 1
        %v691 = vrot.slane %v541, 1
        %v692 = vsel %vm683, %v690, %v691
        %v693 = vrot.slane %v532, 1
        %v694 = vrot.slane %v542, 1
        %v695 = vsel %vm683, %v693, %v694
        %v696 = vrot.slane %v533, 1
        %v697 = vrot.slane %v543, 1
        %v698 = vsel %vm683, %v696, %v697
        %v699 = vrot.slane %v534, 1
        %v700 = vrot.slane %v544, 1
        %v701 = vsel %vm683, %v699, %v700
        %v702 = vrot.slane %v535, 1
        %v703 = vrot.slane %v545, 1
        %v704 = vsel %vm683, %v702, %v703
        %v705 = vrot.slane %v536, 1
        %v706 = vrot.slane %v546, 1
        %v707 = vsel %vm683, %v705, %v706
        %708 = vrot.lane.b32.xlu0 %v686, 8
        %v709 = vpop.permute.xlu0 %708
        %710 = vrot.lane.b32.xlu0 %v689, 8
        %v711 = vpop.permute.xlu0 %710
        %712 = vrot.lane.b32.xlu0 %v692, 8
        %v713 = vpop.permute.xlu0 %712
        %714 = vrot.lane.b32.xlu0 %v695, 8
        %v715 = vpop.permute.xlu0 %714
        %716 = vrot.lane.b32.xlu0 %v698, 8
        %v717 = vpop.permute.xlu0 %716
        %718 = vrot.lane.b32.xlu0 %v701, 8
        %v719 = vpop.permute.xlu0 %718
        %720 = vrot.lane.b32.xlu0 %v704, 8
        %v721 = vpop.permute.xlu0 %720
        %722 = vrot.lane.b32.xlu0 %v707, 8
        %v723 = vpop.permute.xlu0 %722
        %725 = vrot.lane.b32.xlu0 %v530, 12
        %v726 = vpop.permute.xlu0 %725
        %727 = vrot.lane.b32.xlu0 %v531, 12
        %v728 = vpop.permute.xlu0 %727
        %729 = vrot.lane.b32.xlu0 %v532, 12
        %v730 = vpop.permute.xlu0 %729
        %731 = vrot.lane.b32.xlu0 %v533, 12
        %v732 = vpop.permute.xlu0 %731
        %733 = vrot.lane.b32.xlu0 %v534, 12
        %v734 = vpop.permute.xlu0 %733
        %735 = vrot.lane.b32.xlu0 %v535, 12
        %v736 = vpop.permute.xlu0 %735
        %737 = vrot.lane.b32.xlu0 %v536, 12
        %v738 = vpop.permute.xlu0 %737
        %739 = vrot.lane.b32.xlu0 %v537, 12
        %v740 = vpop.permute.xlu0 %739
        %v742 = vshrl.u32 %v537, 16
        %v744 = vshll.u32 %v537, 16
        %v746 = vrot.slane %v744, 1
        %v747 = vor.u32 %v742, %v746
        %v749 = vshll.u32 %v547, 16
        %v751 = vrot.slane %v749, 1
        %v752 = vsel %vm554, %v747, %v751
        %753 = vrot.lane.b32.xlu0 %v578, 16
        %v754 = vpop.permute.xlu0 %753
        %755 = vrot.lane.b32.xlu0 %v590, 16
        %v756 = vpop.permute.xlu0 %755
        %757 = vrot.lane.b32.xlu0 %v602, 16
        %v758 = vpop.permute.xlu0 %757
        %759 = vrot.lane.b32.xlu0 %v614, 16
        %v760 = vpop.permute.xlu0 %759
        %761 = vrot.lane.b32.xlu0 %v626, 16
        %v762 = vpop.permute.xlu0 %761
        %763 = vrot.lane.b32.xlu0 %v638, 16
        %v764 = vpop.permute.xlu0 %763
        %765 = vrot.lane.b32.xlu0 %v650, 16
        %v766 = vpop.permute.xlu0 %765
        %767 = vrot.lane.b32.xlu0 %v752, 16
        %v768 = vpop.permute.xlu0 %767
        %v770 = vrot.slane %v537, 1
        %v771 = vrot.slane %v547, 1
        %v772 = vsel %vm683, %v770, %v771
        %773 = vrot.lane.b32.xlu0 %v689, 20
        %v774 = vpop.permute.xlu0 %773
        %775 = vrot.lane.b32.xlu0 %v692, 20
        %v776 = vpop.permute.xlu0 %775
        %777 = vrot.lane.b32.xlu0 %v695, 20
        %v778 = vpop.permute.xlu0 %777
        %779 = vrot.lane.b32.xlu0 %v698, 20
        %v780 = vpop.permute.xlu0 %779
        %781 = vrot.lane.b32.xlu0 %v701, 20
        %v782 = vpop.permute.xlu0 %781
        %783 = vrot.lane.b32.xlu0 %v704, 20
        %v784 = vpop.permute.xlu0 %783
        %785 = vrot.lane.b32.xlu0 %v707, 20
        %v786 = vpop.permute.xlu0 %785
        %787 = vrot.lane.b32.xlu0 %v772, 20
        %v788 = vpop.permute.xlu0 %787
        %790 = vrot.lane.b32.xlu0 %v531, 24
        %v791 = vpop.permute.xlu0 %790
        %792 = vrot.lane.b32.xlu0 %v532, 24
        %v793 = vpop.permute.xlu0 %792
        %794 = vrot.lane.b32.xlu0 %v533, 24
        %v795 = vpop.permute.xlu0 %794
        %796 = vrot.lane.b32.xlu0 %v534, 24
        %v797 = vpop.permute.xlu0 %796
        %798 = vrot.lane.b32.xlu0 %v535, 24
        %v799 = vpop.permute.xlu0 %798
        %800 = vrot.lane.b32.xlu0 %v536, 24
        %v801 = vpop.permute.xlu0 %800
        %802 = vrot.lane.b32.xlu0 %v537, 24
        %v803 = vpop.permute.xlu0 %802
        %804 = vrot.lane.b32.xlu0 %v538, 24
        %v805 = vpop.permute.xlu0 %804
        %v807 = vshrl.u32 %v538, 16
        %v809 = vshll.u32 %v538, 16
        %v811 = vrot.slane %v809, 1
        %v812 = vor.u32 %v807, %v811
        %v814 = vshll.u32 %v548, 16
        %v816 = vrot.slane %v814, 1
        %v817 = vsel %vm554, %v812, %v816
        %818 = vrot.lane.b32.xlu0 %v590, 28
        %v819 = vpop.permute.xlu0 %818
        %820 = vrot.lane.b32.xlu0 %v602, 28
        %v821 = vpop.permute.xlu0 %820
        %822 = vrot.lane.b32.xlu0 %v614, 28
        %v823 = vpop.permute.xlu0 %822
        %824 = vrot.lane.b32.xlu0 %v626, 28
        %v825 = vpop.permute.xlu0 %824
        %826 = vrot.lane.b32.xlu0 %v638, 28
        %v827 = vpop.permute.xlu0 %826
        %828 = vrot.lane.b32.xlu0 %v650, 28
        %v829 = vpop.permute.xlu0 %828
        %830 = vrot.lane.b32.xlu0 %v752, 28
        %v831 = vpop.permute.xlu0 %830
        %832 = vrot.lane.b32.xlu0 %v817, 28
        %v833 = vpop.permute.xlu0 %832
        %v835 = vrot.slane %v538, 1
        %v836 = vrot.slane %v548, 1
        %v837 = vsel %vm683, %v835, %v836
        %838 = vrot.lane.b32.xlu0 %v692, 32
        %v839 = vpop.permute.xlu0 %838
        %840 = vrot.lane.b32.xlu0 %v695, 32
        %v841 = vpop.permute.xlu0 %840
        %842 = vrot.lane.b32.xlu0 %v698, 32
        %v843 = vpop.permute.xlu0 %842
        %844 = vrot.lane.b32.xlu0 %v701, 32
        %v845 = vpop.permute.xlu0 %844
        %846 = vrot.lane.b32.xlu0 %v704, 32
        %v847 = vpop.permute.xlu0 %846
        %848 = vrot.lane.b32.xlu0 %v707, 32
        %v849 = vpop.permute.xlu0 %848
        %850 = vrot.lane.b32.xlu0 %v772, 32
        %v851 = vpop.permute.xlu0 %850
        %852 = vrot.lane.b32.xlu0 %v837, 32
        %v853 = vpop.permute.xlu0 %852
        %vm854 = vcmask 31744
        %v856 = vsel %vm854, %v529, %v652
        %v858 = vsel %vm854, %v530, %v654
        %v860 = vsel %vm854, %v531, %v656
        %v862 = vsel %vm854, %v532, %v658
        %v864 = vsel %vm854, %v533, %v660
        %v866 = vsel %vm854, %v534, %v662
        %v868 = vsel %vm854, %v535, %v664
        %v870 = vsel %vm854, %v536, %v666
        %vm871 = vcmask 64512
        %v873 = vsel %vm871, %v856, %v709
        %v875 = vsel %vm871, %v858, %v711
        %v877 = vsel %vm871, %v860, %v713
        %v879 = vsel %vm871, %v862, %v715
        %v881 = vsel %vm871, %v864, %v717
        %v883 = vsel %vm871, %v866, %v719
        %v885 = vsel %vm871, %v868, %v721
        %v887 = vsel %vm871, %v870, %v723
        %vm888 = vcmask 97280
        %v890 = vsel %vm888, %v873, %v726
        %v892 = vsel %vm888, %v875, %v728
        %v894 = vsel %vm888, %v877, %v730
        %v896 = vsel %vm888, %v879, %v732
        %v898 = vsel %vm888, %v881, %v734
        %v900 = vsel %vm888, %v883, %v736
        %v902 = vsel %vm888, %v885, %v738
        %v904 = vsel %vm888, %v887, %v740
        %vm905 = vcmask 130048
        %v907 = vsel %vm905, %v890, %v754
        %v909 = vsel %vm905, %v892, %v756
        %v911 = vsel %vm905, %v894, %v758
        %v913 = vsel %vm905, %v896, %v760
        %v915 = vsel %vm905, %v898, %v762
        %v917 = vsel %vm905, %v900, %v764
        %v919 = vsel %vm905, %v902, %v766
        %v921 = vsel %vm905, %v904, %v768
        %vm922 = vcmask 162816
        %v924 = vsel %vm922, %v907, %v774
        %v926 = vsel %vm922, %v909, %v776
        %v928 = vsel %vm922, %v911, %v778
        %v930 = vsel %vm922, %v913, %v780
        %v932 = vsel %vm922, %v915, %v782
        %v934 = vsel %vm922, %v917, %v784
        %v936 = vsel %vm922, %v919, %v786
        %v938 = vsel %vm922, %v921, %v788
        %vm939 = vcmask 195584
        %v941 = vsel %vm939, %v924, %v791
        %v943 = vsel %vm939, %v926, %v793
        %v945 = vsel %vm939, %v928, %v795
        %v947 = vsel %vm939, %v930, %v797
        %v949 = vsel %vm939, %v932, %v799
        %v951 = vsel %vm939, %v934, %v801
        %v953 = vsel %vm939, %v936, %v803
        %v955 = vsel %vm939, %v938, %v805
        %vm956 = vcmask 228352
        %v958 = vsel %vm956, %v941, %v819
        %v960 = vsel %vm956, %v943, %v821
        %v962 = vsel %vm956, %v945, %v823
        %v964 = vsel %vm956, %v947, %v825
        %v966 = vsel %vm956, %v949, %v827
        %v968 = vsel %vm956, %v951, %v829
        %v970 = vsel %vm956, %v953, %v831
        %v972 = vsel %vm956, %v955, %v833
        %vm973 = vcmask 261120
        %v975 = vsel %vm973, %v958, %v839
        %v977 = vsel %vm973, %v960, %v841
        %v979 = vsel %vm973, %v962, %v843
        %v981 = vsel %vm973, %v964, %v845
        %v983 = vsel %vm973, %v966, %v847
        %v985 = vsel %vm973, %v968, %v849
        %v987 = vsel %vm973, %v970, %v851
        %v989 = vsel %vm973, %v972, %v853
        %v995 = vunpack.c.l.b16 %v549
        %v996 = vunpack.c.l.b16 %v550
        %v997 = vunpack.c.l.b16 %v551
        %v998 = vunpack.c.l.b16 %v552
        %v999 = vunpack.c.l.b16 %v553
        %v1000 = vpack.c.b16 %v996, %v995
        %v1001 = vpack.c.b16 %v998, %v997
        %v1002 = vpack.c.b16 %v999, %v999
        %vm1005 = vcmask 293888
        %v1006 = vsel %vm1005, %v975, 0
        %v1008 = vsel %vm1005, %v977, 0
        %v1010 = vsel %vm1005, %v979, 0
        %v1012 = vsel %vm1005, %v981, 0
        %v1014 = vsel %vm1005, %v983, 0
        %v1016 = vsel %vm1005, %v985, 0
        %v1018 = vsel %vm1005, %v987, 0
        %v1020 = vsel %vm1005, %v989, 0
        %vm1022 = vcmask 1041408
        %v1024 = vsel %vm1022, %v1002, 0
        %1026 = vmatprep.subr.bf16.mxu0 0
        %1027 = vmatpush1.bf16.msra.mxu0 %v1000
        %1028 = vmatprep.subr.bf16.mxu0 0
        %1029 = vmatpush1.bf16.msra.mxu0 %v1001
        %1030 = vmatprep.subr.bf16.mxu0 0
        %1031 = vmatpush1.bf16.msra.mxu0 %v1024
        %1032 = vmatprep.subr.bf16.mxu0 0
        %1033 = vmatpush1.bf16.msra.mxu0 0
        %1034 = vmatprep.subr.bf16.mxu0 0
        %1035 = vmatpush1.bf16.msra.mxu0 0
        %1036 = vmatprep.subr.bf16.mxu0 0
        %1037 = vmatpush1.bf16.msra.mxu0 0
        %1038 = vmatprep.subr.bf16.mxu0 0
        %1039 = vmatpush1.bf16.msra.mxu0 0
        %1040 = vmatprep.subr.bf16.mxu0 0
        %1041 = vmatpush1.bf16.msra.mxu0 0
        %1042 = vmatprep.subr.bf16.mxu0 0
        %1043 = vmatpush1.bf16.msra.mxu0 0
        %1044 = vmatprep.subr.bf16.mxu0 0
        %1045 = vmatpush1.bf16.msra.mxu0 0
        %1046 = vmatprep.subr.bf16.mxu0 0
        %1047 = vmatpush1.bf16.msra.mxu0 0
        %1048 = vmatprep.subr.bf16.mxu0 0
        %1049 = vmatpush1.bf16.msra.mxu0 0
        %1050 = vmatprep.subr.bf16.mxu0 0
        %1051 = vmatpush1.bf16.msra.mxu0 0
        %1052 = vmatprep.subr.bf16.mxu0 0
        %1053 = vmatpush1.bf16.msra.mxu0 0
        %1054 = vmatprep.subr.bf16.mxu0 0
        %1055 = vmatpush1.bf16.msra.mxu0 0
        %1056 = vmatprep.subr.bf16.mxu0 0
        %1057 = vmatpush1.bf16.msra.mxu0 0
        %1058 = vmatprep.mubr.bf16.mxu0 0
        %1059 = vmatmul.mubr.bf16.gmra.mrb[0].mxu0 %v1006
        %v1060 = vpop.f32.mrb[0].mxu0
        %v1061 = vadd.f32 0.0, %v1060
        %v1062 = vpop.f32.mrb[0].mxu0
        %v1063 = vpop.f32.mrb[0].mxu0
        %v1064 = vadd.f32 0.0, %v1063
        %v1065 = vpop.f32.mrb[0].mxu0
        %1066 = vmatprep.mubr.bf16.mxu0 0
        %1067 = vmatmul.mubr.bf16.gmra.mrb[0].mxu0 %v1008
        %v1068 = vpop.f32.mrb[0].mxu0
        %v1069 = vadd.f32 0.0, %v1068
        %v1070 = vpop.f32.mrb[0].mxu0
        %v1071 = vpop.f32.mrb[0].mxu0
        %v1072 = vadd.f32 0.0, %v1071
        %v1073 = vpop.f32.mrb[0].mxu0
        %1074 = vmatprep.mubr.bf16.mxu0 0
        %1075 = vmatmul.mubr.bf16.gmra.mrb[0].mxu0 %v1010
        %v1076 = vpop.f32.mrb[0].mxu0
        %v1077 = vadd.f32 0.0, %v1076
        %v1078 = vpop.f32.mrb[0].mxu0
        %v1079 = vpop.f32.mrb[0].mxu0
        %v1080 = vadd.f32 0.0, %v1079
        %v1081 = vpop.f32.mrb[0].mxu0
        %1082 = vmatprep.mubr.bf16.mxu0 0
        %1083 = vmatmul.mubr.bf16.gmra.mrb[0].mxu0 %v1012
        %v1084 = vpop.f32.mrb[0].mxu0
        %v1085 = vadd.f32 0.0, %v1084
        %v1086 = vpop.f32.mrb[0].mxu0
        %v1087 = vpop.f32.mrb[0].mxu0
        %v1088 = vadd.f32 0.0, %v1087
        %v1089 = vpop.f32.mrb[0].mxu0
        %1090 = vmatprep.mubr.bf16.mxu0 0
        %1091 = vmatmul.mubr.bf16.gmra.mrb[0].mxu0 %v1014
        %v1092 = vpop.f32.mrb[0].mxu0
        %v1093 = vadd.f32 0.0, %v1092
        %v1094 = vpop.f32.mrb[0].mxu0
        %v1095 = vpop.f32.mrb[0].mxu0
        %v1096 = vadd.f32 0.0, %v1095
        %v1097 = vpop.f32.mrb[0].mxu0
        %1098 = vmatprep.mubr.bf16.mxu0 0
        %1099 = vmatmul.mubr.bf16.gmra.mrb[0].mxu0 %v1016
        %v1100 = vpop.f32.mrb[0].mxu0
        %v1101 = vadd.f32 0.0, %v1100
        %v1102 = vpop.f32.mrb[0].mxu0
        %v1103 = vpop.f32.mrb[0].mxu0
        %v1104 = vadd.f32 0.0, %v1103
        %v1105 = vpop.f32.mrb[0].mxu0
        %1106 = vmatprep.mubr.bf16.mxu0 0
        %1107 = vmatmul.mubr.bf16.gmra.mrb[0].mxu0 %v1018
        %v1108 = vpop.f32.mrb[0].mxu0
        %v1109 = vadd.f32 0.0, %v1108
        %v1110 = vpop.f32.mrb[0].mxu0
        %v1111 = vpop.f32.mrb[0].mxu0
        %v1112 = vadd.f32 0.0, %v1111
        %v1113 = vpop.f32.mrb[0].mxu0
        %1114 = vmatprep.mubr.bf16.mxu0 0
        %1115 = vmatmul.mubr.bf16.gmra.mrb[0].mxu0 %v1020
        %v1116 = vpop.f32.mrb[0].mxu0
        %v1117 = vadd.f32 0.0, %v1116
        %v1118 = vpop.f32.mrb[0].mxu0
        %v1119 = vpop.f32.mrb[0].mxu0
        %v1120 = vadd.f32 0.0, %v1119
        %v1121 = vpop.f32.mrb[0].mxu0
        %1122 = vdwg.mxu0
        %v1123 = vadd.f32 %v1061, %v1064
        %v1124 = vadd.f32 %v1123, %v1069
        %v1125 = vadd.f32 %v1124, %v1072
        %v1126 = vadd.f32 %v1125, %v1077
        %v1127 = vadd.f32 %v1126, %v1080
        %v1128 = vadd.f32 %v1127, %v1085
        %v1129 = vadd.f32 %v1128, %v1088
        %v1130 = vadd.f32 %v1129, %v1093
        %v1131 = vadd.f32 %v1130, %v1096
        %v1132 = vadd.f32 %v1131, %v1101
        %v1133 = vadd.f32 %v1132, %v1104
        %v1134 = vadd.f32 %v1133, %v1109
        %v1135 = vadd.f32 %v1134, %v1112
        %v1136 = vadd.f32 %v1135, %v1117
        %v1137 = vadd.f32 %v1136, %v1120
        %v1138 = vrot.slane %v1137, 4
        %v1139 = vadd.f32 %v1137, %v1138
        %v1140 = vrot.slane %v1139, 2
        %v1141 = vadd.f32 %v1139, %v1140
        %v1142 = vrot.slane %v1141, 1
        %v1143 = vadd.f32 %v1141, %v1142
        %v1144 = vmul.f32 %v1061, %v1061
        %v1145 = vmul.f32 %v1064, %v1064
        %v1146 = vmul.f32 %v1069, %v1069
        %v1147 = vmul.f32 %v1072, %v1072
        %v1148 = vmul.f32 %v1077, %v1077
        %v1149 = vmul.f32 %v1080, %v1080
        %v1150 = vmul.f32 %v1085, %v1085
        %v1151 = vmul.f32 %v1088, %v1088
        %v1152 = vmul.f32 %v1093, %v1093
        %v1153 = vmul.f32 %v1096, %v1096
        %v1154 = vmul.f32 %v1101, %v1101
        %v1155 = vmul.f32 %v1104, %v1104
        %v1156 = vmul.f32 %v1109, %v1109
        %v1157 = vmul.f32 %v1112, %v1112
        %v1158 = vmul.f32 %v1117, %v1117
        %v1159 = vmul.f32 %v1120, %v1120
        %v1160 = vadd.f32 %v1144, %v1145
        %v1161 = vadd.f32 %v1160, %v1146
        %v1162 = vadd.f32 %v1161, %v1147
        %v1163 = vadd.f32 %v1162, %v1148
        %v1164 = vadd.f32 %v1163, %v1149
        %v1165 = vadd.f32 %v1164, %v1150
        %v1166 = vadd.f32 %v1165, %v1151
        %v1167 = vadd.f32 %v1166, %v1152
        %v1168 = vadd.f32 %v1167, %v1153
        %v1169 = vadd.f32 %v1168, %v1154
        %v1170 = vadd.f32 %v1169, %v1155
        %v1171 = vadd.f32 %v1170, %v1156
        %v1172 = vadd.f32 %v1171, %v1157
        %v1173 = vadd.f32 %v1172, %v1158
        %v1174 = vadd.f32 %v1173, %v1159
        %v1175 = vrot.slane %v1174, 4
        %v1176 = vadd.f32 %v1174, %v1175
        %v1177 = vrot.slane %v1176, 2
        %v1178 = vadd.f32 %v1176, %v1177
        %v1179 = vrot.slane %v1178, 1
        %v1180 = vadd.f32 %v1178, %v1179
        %vm1181 = vcmask 1040384
        %v1182 = vsel %vm1181, %v1143, %v1180
        %1183 = vst [vmem:[%s307] sm:$0x3] %v1182
        %s1184 = sand.u32 %s161, 1
        %s1185 = scalar_lea.sflag [#allocation3], %s1184
        %s1186 = sand.u32 %s161, 1
        %s1187 = smul.addr %s1186, 2
        %s1188 = scalar_lea.vmem [#allocation2], %s1187
        // Predicated region
        $region37: #{tpu_custom_call.1} parent=35 // pred_check
          %p1189 = pneg %p171
        $region38: #{tpu_custom_call.1} parent=35 // pred_check_branch
          %1191 = sbr.rel (%p1189) target = $region40
        $region39: #{tpu_custom_call.1} parent=35 // pred_region
          %s1193 = ssub.s32 32, 32
          %1194 = vsyncadd %s1185, %s1193
          %s1195 = smul.addr %s22, 2
          %s1196 = sadd.s32 %s23, %s1195
          %s1197 = smul.addr %s1196, 32
          %s1198 = scalar_lea.hbm %s4, %s1197
          %s1200 = sshll.u32 %s1188, 4
          %s1201 = int_to_ptr.vmem [resolvable:$true] %s1200
          %1203 = dma.vmem_to_hbm [thread:$0]  %s1201, 32, %s1198, %s1185
        $region40: #{tpu_custom_call.1} parent=35 // pred_fallthru
          _
      $region36: #{tpu_custom_call.1} parent=5 // pred_fallthru
        _
      %p1204 = scmp.le.s32.totalorder 2, %s13
      // Predicated region
      $region41: #{tpu_custom_call.1} parent=5 // pred_check
        %p1205 = pneg %p1204
      $region42: #{tpu_custom_call.1} parent=5 // pred_check_branch
        %1207 = sbr.rel (%p1205) target = $region44
      $region43: #{tpu_custom_call.1} parent=5 // pred_region
        %s1208 = ssub.s32 %s13, 2
        // Predicated region
        $region45: #{tpu_custom_call.1} parent=43 // pred_check
          %p1209 = pneg %p177
        $region46: #{tpu_custom_call.1} parent=43 // pred_check_branch
          %1211 = sbr.rel (%p1209) target = $region48
        $region47: #{tpu_custom_call.1} parent=43 // pred_region
          %s1212 = sand.u32 %s162, 1
          %s1213 = scalar_lea.sflag [#allocation3], %s1212
          %s1214 = sand.u32 %s162, 1
          %s1215 = smul.addr %s1214, 2
          %s1216 = scalar_lea.vmem [#allocation2], %s1215
          %1217 = dma.done %s1213, 32
        $region48: #{tpu_custom_call.1} parent=43 // pred_fallthru
          _
      $region44: #{tpu_custom_call.1} parent=5 // pred_fallthru
        _
    $region6: #{tpu_custom_call.1} parent=1 // loop_footer
      %s17 = sadd.s32 1, %s13
    $region7: #{tpu_custom_call.1} parent=1 // loop_footer_branch
      %12 = sbr.rel target = $region3
    $region8: #{tpu_custom_call.1} parent=1 // loop_exit
      _
    %1218 = vsyncpa [#allocation3], 1
    %s1219 = scalar_lea.sflag [#allocation3], 1
    %1220 = vsyncpa %s1219, 1

</llo_original>
